<compile_context>
chip_gen: v5e
topology: v5e:2x2
jax: 0.10.0
libtpu: 0.0.40
codegen_flags: <defaults>
</compile_context>

<pallas_src>
import jax
import jax.numpy as jnp
import numpy as np
from jax.experimental import pallas as pl
from jax.experimental.pallas import tpu as pltpu


def _round_up(x, m):
    return ((x + m - 1) // m) * m


def tanh_ae_kernel(x_ref, w1t_ref, b1_ref, w2t_ref, b2_ref, out_ref):
    """One (tile_n, dim) row block:  out = tanh(x @ W1^T + b1) @ W2^T + b2.

    Refs:
      x_ref   : (tile_n, dim)  input rows
      w1t_ref : (dim, K)       encoder weight, pre-transposed
      b1_ref  : (1, K)         encoder bias
      w2t_ref : (K, dim)       decoder weight, pre-transposed
      b2_ref  : (1, dim)       decoder bias
      out_ref : (tile_n, dim)  reconstruction
    """
    # Encoder matmul (MXU) + bias add (VPU) + tanh (EUP). Hidden stays in vregs.
    h = jnp.tanh(
        jnp.dot(x_ref[...], w1t_ref[...], preferred_element_type=jnp.float32)
        + b1_ref[...]
    )
    # Decoder matmul (MXU) + bias add.
    out_ref[...] = (
        jnp.dot(h, w2t_ref[...], preferred_element_type=jnp.float32)
        + b2_ref[...]
    ).astype(out_ref.dtype)


def tanh_ae_forward(x, w1, b1, w2, b2, *, tile_n=None, target_step_bytes=2 << 20):
    """Pallas forward for tanh_AE.

    Args:
      x  : (N, dim)  input batch
      w1 : (K, dim)  model[0].weight   (PyTorch layout)
      b1 : (K,)      model[0].bias
      w2 : (dim, K)  model[2].weight
      b2 : (dim,)    model[2].bias
      tile_n : optional row-tile override (rounded up to a multiple of 8).
    """
    x = jnp.asarray(x)
    N, dim = x.shape
    K = w1.shape[0]
    itemsize = x.dtype.itemsize

    # Wrapper-side layout plumbing (free): transpose weights, make biases 2-D.
    w1t = jnp.asarray(w1, jnp.float32).T              # (dim, K)
    w2t = jnp.asarray(w2, jnp.float32).T              # (K, dim)
    b1r = jnp.asarray(b1, jnp.float32).reshape(1, K)
    b2r = jnp.asarray(b2, jnp.float32).reshape(1, dim)

    # --- Row-tile selection: HBM-bound kernel, so make each grid step move
    # ~target_step_bytes of x+out traffic (>> the ~0.35 us per-step overhead),
    # capped at 4096 rows, multiple of 8 (f32 sublanes), and >= 2 grid steps
    # whenever possible so both v7x TensorCores get work.
    if tile_n is None:
        per_row_bytes = 2 * dim * itemsize            # x read + out write
        target_rows = max(8, target_step_bytes // per_row_bytes)
        target_rows = max(8, min(int(target_rows) // 8 * 8, 4096))
        num_steps = pl.cdiv(N, target_rows)
        if N > 8:
            num_steps = max(num_steps, 2)              # keep both v7x TCs busy
        tile_n = _round_up(pl.cdiv(N, num_steps), 8)
    else:
        tile_n = _round_up(int(tile_n), 8)

    grid_n = pl.cdiv(N, tile_n)
    n_pad = grid_n * tile_n
    x_in = x if n_pad == N else jnp.pad(x, ((0, n_pad - N), (0, 0)))

    # --- Advisory cost estimate: two matmuls + one tanh per row, HBM-dominated.
    weight_bytes = (dim * K + K * dim + K + dim) * 4
    cost = pl.CostEstimate(
        flops=4 * N * dim * K,                         # 2*N*dim*K per matmul
        transcendentals=N * K,                         # tanh
        bytes_accessed=2 * N * dim * itemsize + weight_bytes,
    )

    # --- Explicit VMEM budget: double-buffered x and out row tiles plus the
    # (double-buffered by default) replicated weights/biases, 2x headroom.
    # Floor at 32 MiB (>= all default scoped limits), cap at 48 MiB (< v7x's
    # 64 MiB per-TC physical VMEM).
    io_tile_bytes = tile_n * dim * itemsize
    vmem_needed = 2 * (2 * io_tile_bytes) + 2 * weight_bytes
    vmem_limit = int(min(max(2 * vmem_needed, 32 << 20), 48 << 20))

    out = pl.pallas_call(
        tanh_ae_kernel,
        out_shape=jax.ShapeDtypeStruct((n_pad, dim), x.dtype),
        grid=(grid_n,),
        in_specs=[
            pl.BlockSpec((tile_n, dim), lambda i: (i, 0)),   # x rows
            pl.BlockSpec((dim, K), lambda i: (0, 0)),        # W1^T (resident)
            pl.BlockSpec((1, K), lambda i: (0, 0)),          # b1
            pl.BlockSpec((K, dim), lambda i: (0, 0)),        # W2^T (resident)
            pl.BlockSpec((1, dim), lambda i: (0, 0)),        # b2
        ],
        out_specs=pl.BlockSpec((tile_n, dim), lambda i: (i, 0)),
        compiler_params=pltpu.CompilerParams(
            dimension_semantics=("parallel",),               # shard rows over TCs
            vmem_limit_bytes=vmem_limit,
        ),
        cost_estimate=cost,
    )(x_in, w1t, b1r, w2t, b2r)

    return out[:N] if n_pad != N else out


def tanh_ae_reference(x, w1, b1, w2, b2):
    """Pure-JAX reference matching nn.Linear -> nn.Tanh -> nn.Linear."""
    h = jnp.tanh(x @ w1.T + b1)
    return h @ w2.T + b2


# TODO(synk): fit()/loss()/test()/reconstruct()/saver()/plot_loss() are
# training / IO / plotting utilities, not part of the forward pass; only
# forward() is implemented as a kernel.

if __name__ == "__main__":
    # Small shapes consistent with the module: dim features, K-dim bottleneck.
    dim, K = 64, 32

    key = jax.random.PRNGKey(0)
    ks = jax.random.split(key, 5)

    def u(k, shape, fan_in):
        bound = 1.0 / np.sqrt(fan_in)  # PyTorch nn.Linear default init bound
        return jax.random.uniform(k, shape, jnp.float32, -bound, bound)

    w1 = u(ks[1], (K, dim), dim)   # model[0].weight
    b1 = u(ks[2], (K,), dim)       # model[0].bias
    w2 = u(ks[3], (dim, K), K)     # model[2].weight
    b2 = u(ks[4], (dim,), K)       # model[2].bias

    # Case 1: batch divisible by the chosen tile (auto tiling -> 2 grid steps).
    x0 = jax.random.normal(ks[0], (128, dim), jnp.float32)
    out0 = jax.block_until_ready(tanh_ae_forward(x0, w1, b1, w2, b2))
    ref0 = tanh_ae_reference(x0, w1, b1, w2, b2)
    np.testing.assert_allclose(np.asarray(out0), np.asarray(ref0),
                               rtol=5e-5, atol=5e-5)

    # Case 2: ragged batch (not a multiple of 8) -> exercises wrapper padding.
    x1 = jax.random.normal(jax.random.PRNGKey(1), (100, dim), jnp.float32)
    out1 = jax.block_until_ready(tanh_ae_forward(x1, w1, b1, w2, b2))
    ref1 = tanh_ae_reference(x1, w1, b1, w2, b2)
    np.testing.assert_allclose(np.asarray(out1), np.asarray(ref1),
                               rtol=5e-5, atol=5e-5)

    print("KERNEL_OK")
</pallas_src>

<mosaic_0001>
module attributes {stable_mosaic.version = 11 : i64} {
  func.func @tanh_ae_kernel(%arg0: i32, %arg1: memref<64x64xf32, #tpu.memory_space<vmem>>, %arg2: memref<64x32xf32, #tpu.memory_space<vmem>>, %arg3: memref<1x32xf32, #tpu.memory_space<vmem>>, %arg4: memref<32x64xf32, #tpu.memory_space<vmem>>, %arg5: memref<1x64xf32, #tpu.memory_space<vmem>>, %arg6: memref<64x64xf32, #tpu.memory_space<vmem>>) attributes {dimension_semantics = [#tpu.dimension_semantics<parallel>], iteration_bounds = array<i64: 2>, scalar_prefetch = 0 : i64, scratch_operands = 0 : i64, tpu.core_type = #tpu.core_type<tc>, window_params = [{transform_indices = @transform_0, window_bounds = array<i64: 64, 64>}, {pipeline_mode = #tpu.pipeline_mode<synchronous>, transform_indices = @transform_1, window_bounds = array<i64: 64, 32>}, {pipeline_mode = #tpu.pipeline_mode<synchronous>, transform_indices = @transform_2, window_bounds = array<i64: 1, 32>}, {pipeline_mode = #tpu.pipeline_mode<synchronous>, transform_indices = @transform_3, window_bounds = array<i64: 32, 64>}, {pipeline_mode = #tpu.pipeline_mode<synchronous>, transform_indices = @transform_4, window_bounds = array<i64: 1, 64>}, {transform_indices = @transform_5, window_bounds = array<i64: 64, 64>}]} {
    %c0 = arith.constant 0 : index
    %c0_0 = arith.constant 0 : index
    %0 = vector.load %arg1[%c0, %c0_0] : memref<64x64xf32, #tpu.memory_space<vmem>>, vector<64x64xf32>
    %c0_1 = arith.constant 0 : index
    %c0_2 = arith.constant 0 : index
    %1 = vector.load %arg2[%c0_1, %c0_2] : memref<64x32xf32, #tpu.memory_space<vmem>>, vector<64x32xf32>
    %cst = arith.constant dense<0.000000e+00> : vector<64x32xf32>
    %2 = tpu.matmul %0, %1, %cst {dimension_numbers = #tpu.dot_dimension_numbers<[1], [0], [0], [1], [0, 0, 1, 1], [], []>} : vector<64x64xf32>, vector<64x32xf32>, vector<64x32xf32> -> vector<64x32xf32>
    %c0_3 = arith.constant 0 : index
    %c0_4 = arith.constant 0 : index
    %3 = vector.load %arg3[%c0_3, %c0_4] : memref<1x32xf32, #tpu.memory_space<vmem>>, vector<1x32xf32>
    %4 = vector.broadcast %3 : vector<1x32xf32> to vector<64x32xf32>
    %5 = arith.addf %2, %4 : vector<64x32xf32>
    %6 = math.tanh %5 : vector<64x32xf32>
    %c0_5 = arith.constant 0 : index
    %c0_6 = arith.constant 0 : index
    %7 = vector.load %arg4[%c0_5, %c0_6] : memref<32x64xf32, #tpu.memory_space<vmem>>, vector<32x64xf32>
    %cst_7 = arith.constant dense<0.000000e+00> : vector<64x64xf32>
    %8 = tpu.matmul %6, %7, %cst_7 {dimension_numbers = #tpu.dot_dimension_numbers<[1], [0], [0], [1], [0, 0, 1, 1], [], []>} : vector<64x32xf32>, vector<32x64xf32>, vector<64x64xf32> -> vector<64x64xf32>
    %c0_8 = arith.constant 0 : index
    %c0_9 = arith.constant 0 : index
    %9 = vector.load %arg5[%c0_8, %c0_9] : memref<1x64xf32, #tpu.memory_space<vmem>>, vector<1x64xf32>
    %10 = vector.broadcast %9 : vector<1x64xf32> to vector<64x64xf32>
    %11 = arith.addf %8, %10 : vector<64x64xf32>
    %c0_10 = arith.constant 0 : index
    %c0_11 = arith.constant 0 : index
    %12 = vector.load %arg6[%c0_10, %c0_11] : memref<64x64xf32, #tpu.memory_space<vmem>>, vector<64x64xf32>
    tpu.vector_store %arg6[%c0_10, %c0_11], %11 {strides = array<i32>} : memref<64x64xf32, #tpu.memory_space<vmem>>, vector<64x64xf32>,
    return
  }
  func.func @transform_0(%arg0: i32) -> (i32, i32) {
    %c0_i32 = arith.constant 0 : i32
    %c0_i32_0 = arith.constant 0 : i32
    return %arg0, %c0_i32 : i32, i32
  }
  func.func @transform_1(%arg0: i32) -> (i32, i32) {
    %c0_i32 = arith.constant 0 : i32
    %c0_i32_0 = arith.constant 0 : i32
    %c0_i32_1 = arith.constant 0 : i32
    return %c0_i32, %c0_i32_0 : i32, i32
  }
  func.func @transform_2(%arg0: i32) -> (i32, i32) {
    %c0_i32 = arith.constant 0 : i32
    %c0_i32_0 = arith.constant 0 : i32
    %c0_i32_1 = arith.constant 0 : i32
    return %c0_i32, %c0_i32_0 : i32, i32
  }
  func.func @transform_3(%arg0: i32) -> (i32, i32) {
    %c0_i32 = arith.constant 0 : i32
    %c0_i32_0 = arith.constant 0 : i32
    %c0_i32_1 = arith.constant 0 : i32
    return %c0_i32, %c0_i32_0 : i32, i32
  }
  func.func @transform_4(%arg0: i32) -> (i32, i32) {
    %c0_i32 = arith.constant 0 : i32
    %c0_i32_0 = arith.constant 0 : i32
    %c0_i32_1 = arith.constant 0 : i32
    return %c0_i32, %c0_i32_0 : i32, i32
  }
  func.func @transform_5(%arg0: i32) -> (i32, i32) {
    %c0_i32 = arith.constant 0 : i32
    %c0_i32_0 = arith.constant 0 : i32
    return %arg0, %c0_i32 : i32, i32
  }
}

</mosaic_0001>

<llo_original>
// kernel: tpu_custom_call.1
$region0: #{tpu_custom_call.1}
  #allocation0 [shape = 'u32[]', space=smem, size = 0x4, offset = 0x4, fixed_abs, tag = 'smem constant byte address 0x4 - core index']
  #allocation1 [shape = 'u32[72,128]{1,0:T(1,128)}', space=vmem, size = 0x9000, scoped, tag = 'internal scratch']
  %s0 = inlined_call_operand.vmem [shape: f32[128,64], index: 0, kind: input, shape index: {}]
  %s1 = inlined_call_operand.vmem [shape: f32[64,32], index: 1, kind: input, shape index: {}]
  %s2 = inlined_call_operand.vmem [shape: f32[1,32], index: 2, kind: input, shape index: {}]
  %s3 = inlined_call_operand.vmem [shape: f32[32,64], index: 3, kind: input, shape index: {}]
  %s4 = inlined_call_operand.vmem [shape: f32[1,64], index: 4, kind: input, shape index: {}]
  %s5 = inlined_call_operand.vmem [shape: f32[128,64], index: 5, kind: output, shape index: {}]
  %s6 = sld [smem:[#allocation0]]
  $region53: #{tpu_custom_call.1} parent=0
    _
  %s8 = ssub.s32 1, %s6
  %s9 = scalar_select 0, %s8, %s6
  loop: start=0, step=1, limit=4
  $region2: #{tpu_custom_call.1} parent=0 // loop_pre_header
    _
  $region3: #{tpu_custom_call.1} parent=0 // loop_header
    %s11 = sphi 0, %s15
    %p12 = scmp.ge.s32.totalorder %s11, 4
    %s21 = sphi 0, %s23
    %s24 = sphi 0, %s21
    %s25 = sphi 0, %s24
    %s41 = sphi 0, %s25
    %s45 = sphi 0, %s45
    %s47 = sphi 0, %s45
    %s48 = sphi 0, %s47
    %s62 = sphi 0, %s48
    %s66 = sphi 0, %s66
    %s68 = sphi 0, %s66
    %s69 = sphi 0, %s68
    %s83 = sphi 0, %s69
    %s87 = sphi 0, %s87
    %s89 = sphi 0, %s87
    %s90 = sphi 0, %s89
    %s104 = sphi 0, %s90
    %s108 = sphi 0, %s108
    %s110 = sphi 0, %s108
    %s111 = sphi 0, %s110
    %s125 = sphi 0, %s111
    %s131 = sphi 0, %s133
    %s134 = sphi 0, %s131
    %s135 = sphi 0, %s134
    %s151 = sphi 0, %s135
  $region4: #{tpu_custom_call.1} parent=0 // loop_header_branch
    %14 = sbr.rel (%p12) target = $region8
  $region5: #{tpu_custom_call.1} parent=0 // loop_body
    %s16 = ssub.s32 %s11, 1
    %s17 = ssub.s32 %s11, 2
    %s18 = sadd.s32 %s11, 1
    %s19 = ssub.s32 %s11, %s18
    %p20 = scmp.eq.s32.totalorder %s19, 0
    %s22 = sadd.s32 %s21, 1
    %s23 = scalar_select %p20, %s21, %s22
    %p26 = pneg %p20
    %p27 = scmp.eq.s32.totalorder %s11, 1
    %p28 = por %p26, %p27
    %p29 = scmp.ne.s32.totalorder %s21, %s24
    %p30 = scmp.eq.s32.totalorder %s11, 0
    %p31 = por %p29, %p30
    %p32 = scmp.ne.s32.totalorder %s21, %s24
    %p33 = scmp.eq.s32.totalorder %s16, 1
    %p34 = por %p32, %p33
    %p35 = scmp.ne.s32.totalorder %s24, %s25
    %p36 = scmp.eq.s32.totalorder %s16, 0
    %p37 = por %p35, %p36
    %p38 = scmp.ne.s32.totalorder %s24, %s25
    %p39 = scmp.eq.s32.totalorder %s17, 1
    %p40 = por %p38, %p39
    %p42 = scmp.ne.s32.totalorder %s25, %s41
    %p43 = scmp.eq.s32.totalorder %s17, 0
    %p44 = por %p42, %p43
    %s46 = sadd.s32 %s45, 1
    %p49 = scmp.eq.s32.totalorder %s11, 1
    %p50 = scmp.ne.s32.totalorder %s45, %s47
    %p51 = scmp.eq.s32.totalorder %s11, 0
    %p52 = por %p50, %p51
    %p53 = scmp.ne.s32.totalorder %s45, %s47
    %p54 = scmp.eq.s32.totalorder %s16, 1
    %p55 = por %p53, %p54
    %p56 = scmp.ne.s32.totalorder %s47, %s48
    %p57 = scmp.eq.s32.totalorder %s16, 0
    %p58 = por %p56, %p57
    %p59 = scmp.ne.s32.totalorder %s47, %s48
    %p60 = scmp.eq.s32.totalorder %s17, 1
    %p61 = por %p59, %p60
    %p63 = scmp.ne.s32.totalorder %s48, %s62
    %p64 = scmp.eq.s32.totalorder %s17, 0
    %p65 = por %p63, %p64
    %s67 = sadd.s32 %s66, 1
    %p70 = scmp.eq.s32.totalorder %s11, 1
    %p71 = scmp.ne.s32.totalorder %s66, %s68
    %p72 = scmp.eq.s32.totalorder %s11, 0
    %p73 = por %p71, %p72
    %p74 = scmp.ne.s32.totalorder %s66, %s68
    %p75 = scmp.eq.s32.totalorder %s16, 1
    %p76 = por %p74, %p75
    %p77 = scmp.ne.s32.totalorder %s68, %s69
    %p78 = scmp.eq.s32.totalorder %s16, 0
    %p79 = por %p77, %p78
    %p80 = scmp.ne.s32.totalorder %s68, %s69
    %p81 = scmp.eq.s32.totalorder %s17, 1
    %p82 = por %p80, %p81
    %p84 = scmp.ne.s32.totalorder %s69, %s83
    %p85 = scmp.eq.s32.totalorder %s17, 0
    %p86 = por %p84, %p85
    %s88 = sadd.s32 %s87, 1
    %p91 = scmp.eq.s32.totalorder %s11, 1
    %p92 = scmp.ne.s32.totalorder %s87, %s89
    %p93 = scmp.eq.s32.totalorder %s11, 0
    %p94 = por %p92, %p93
    %p95 = scmp.ne.s32.totalorder %s87, %s89
    %p96 = scmp.eq.s32.totalorder %s16, 1
    %p97 = por %p95, %p96
    %p98 = scmp.ne.s32.totalorder %s89, %s90
    %p99 = scmp.eq.s32.totalorder %s16, 0
    %p100 = por %p98, %p99
    %p101 = scmp.ne.s32.totalorder %s89, %s90
    %p102 = scmp.eq.s32.totalorder %s17, 1
    %p103 = por %p101, %p102
    %p105 = scmp.ne.s32.totalorder %s90, %s104
    %p106 = scmp.eq.s32.totalorder %s17, 0
    %p107 = por %p105, %p106
    %s109 = sadd.s32 %s108, 1
    %p112 = scmp.eq.s32.totalorder %s11, 1
    %p113 = scmp.ne.s32.totalorder %s108, %s110
    %p114 = scmp.eq.s32.totalorder %s11, 0
    %p115 = por %p113, %p114
    %p116 = scmp.ne.s32.totalorder %s108, %s110
    %p117 = scmp.eq.s32.totalorder %s16, 1
    %p118 = por %p116, %p117
    %p119 = scmp.ne.s32.totalorder %s110, %s111
    %p120 = scmp.eq.s32.totalorder %s16, 0
    %p121 = por %p119, %p120
    %p122 = scmp.ne.s32.totalorder %s110, %s111
    %p123 = scmp.eq.s32.totalorder %s17, 1
    %p124 = por %p122, %p123
    %p126 = scmp.ne.s32.totalorder %s111, %s125
    %p127 = scmp.eq.s32.totalorder %s17, 0
    %p128 = por %p126, %p127
    %s129 = ssub.s32 %s11, %s18
    %p130 = scmp.eq.s32.totalorder %s129, 0
    %s132 = sadd.s32 %s131, 1
    %s133 = scalar_select %p130, %s131, %s132
    %p136 = pneg %p130
    %p137 = scmp.eq.s32.totalorder %s11, 1
    %p138 = por %p136, %p137
    %p139 = scmp.ne.s32.totalorder %s131, %s134
    %p140 = scmp.eq.s32.totalorder %s11, 0
    %p141 = por %p139, %p140
    %p142 = scmp.ne.s32.totalorder %s131, %s134
    %p143 = scmp.eq.s32.totalorder %s16, 1
    %p144 = por %p142, %p143
    %p145 = scmp.ne.s32.totalorder %s134, %s135
    %p146 = scmp.eq.s32.totalorder %s16, 0
    %p147 = por %p145, %p146
    %p148 = scmp.ne.s32.totalorder %s134, %s135
    %p149 = scmp.eq.s32.totalorder %s17, 1
    %p150 = por %p148, %p149
    %p152 = scmp.ne.s32.totalorder %s135, %s151
    %p153 = scmp.eq.s32.totalorder %s17, 0
    %p154 = por %p152, %p153
    %p155 = scmp.le.s32.totalorder 1, %s11
    %p156 = scmp.lt.s32.totalorder %s11, 3
    %p157 = pnand %p155, %p156
    %p158 = pneg %p157
    // Predicated region
    $region9: #{tpu_custom_call.1} parent=5 // pred_check
      _
    $region10: #{tpu_custom_call.1} parent=5 // pred_check_branch
      %160 = sbr.rel (%p157) target = $region12
    $region11: #{tpu_custom_call.1} parent=5 // pred_region
      %s161 = ssub.s32 %s11, 1
      // Predicated region
      $region13: #{tpu_custom_call.1} parent=11 // pred_check
        %p162 = pneg %p58
      $region14: #{tpu_custom_call.1} parent=11 // pred_check_branch
        %164 = sbr.rel (%p162) target = $region16
      $region15: #{tpu_custom_call.1} parent=11 // pred_region
        _
      $region16: #{tpu_custom_call.1} parent=11 // pred_fallthru
        _
      // Predicated region
      $region17: #{tpu_custom_call.1} parent=11 // pred_check
        %p165 = pneg %p79
      $region18: #{tpu_custom_call.1} parent=11 // pred_check_branch
        %167 = sbr.rel (%p165) target = $region20
      $region19: #{tpu_custom_call.1} parent=11 // pred_region
        _
      $region20: #{tpu_custom_call.1} parent=11 // pred_fallthru
        _
      // Predicated region
      $region21: #{tpu_custom_call.1} parent=11 // pred_check
        %p168 = pneg %p100
      $region22: #{tpu_custom_call.1} parent=11 // pred_check_branch
        %170 = sbr.rel (%p168) target = $region24
      $region23: #{tpu_custom_call.1} parent=11 // pred_region
        _
      $region24: #{tpu_custom_call.1} parent=11 // pred_fallthru
        _
      // Predicated region
      $region25: #{tpu_custom_call.1} parent=11 // pred_check
        %p171 = pneg %p121
      $region26: #{tpu_custom_call.1} parent=11 // pred_check_branch
        %173 = sbr.rel (%p171) target = $region28
      $region27: #{tpu_custom_call.1} parent=11 // pred_region
        _
      $region28: #{tpu_custom_call.1} parent=11 // pred_fallthru
        _
    $region12: #{tpu_custom_call.1} parent=5 // pred_fallthru
      _
    %p174 = scmp.lt.s32.totalorder %s11, 2
    // Predicated region
    $region29: #{tpu_custom_call.1} parent=5 // pred_check
      %p175 = pneg %p174
    $region30: #{tpu_custom_call.1} parent=5 // pred_check_branch
      %177 = sbr.rel (%p175) target = $region32
    $region31: #{tpu_custom_call.1} parent=5 // pred_region
      // Predicated region
      $region33: #{tpu_custom_call.1} parent=31 // pred_check
        %p178 = pneg %p31
      $region34: #{tpu_custom_call.1} parent=31 // pred_check_branch
        %180 = sbr.rel (%p178) target = $region36
      $region35: #{tpu_custom_call.1} parent=31 // pred_region
        %s181 = smul.u32 8, %s11
        %p182 = scmp.lt.s32.totalorder %s181, 15
        %s183 = scalar_select %p182, %s181, 15
        %s184 = smul.addr %s183, 8
        %s185 = scalar_lea.vmem %s0, %s184
        %s186 = smul.u32 8, %s11
      $region36: #{tpu_custom_call.1} parent=31 // pred_fallthru
        _
    $region32: #{tpu_custom_call.1} parent=5 // pred_fallthru
      _
    %p187 = scmp.le.s32.totalorder 1, %s11
    %p188 = scmp.lt.s32.totalorder %s11, 3
    %p189 = pnand %p187, %p188
    %p190 = pneg %p189
    // Predicated region
    $region37: #{tpu_custom_call.1} parent=5 // pred_check
      _
    $region38: #{tpu_custom_call.1} parent=5 // pred_check_branch
      %192 = sbr.rel (%p189) target = $region40
    $region39: #{tpu_custom_call.1} parent=5 // pred_region
      %s193 = ssub.s32 %s11, 1
      %s194 = smul.u32 8, %s16
      %p195 = scmp.lt.s32.totalorder %s194, 15
      %s196 = scalar_select %p195, %s194, 15
      %s197 = smul.addr %s196, 8
      %s198 = scalar_lea.vmem %s0, %s197
      %p199 = pneg %p37
      %p200 = pneg %p34
      %p201 = pneg %p58
      %p202 = pneg %p55
      %p203 = pneg %p79
      %p204 = pneg %p76
      %p205 = pneg %p100
      %p206 = pneg %p97
      %p207 = pneg %p121
      %p208 = pneg %p118
      %p209 = pneg %p147
      %p210 = pneg %p144
      %s211 = smul.u32 8, %s16
      %p212 = scmp.lt.s32.totalorder %s211, 15
      %s213 = scalar_select %p212, %s211, 15
      %s214 = smul.addr %s213, 8
      %s215 = scalar_lea.vmem %s5, %s214
      %s216 = smul.u32 8, %s16
      %p217 = scmp.lt.s32.totalorder %s216, 15
      %s218 = scalar_select %p217, %s216, 15
      %s219 = smul.addr %s218, 8
      %s220 = scalar_lea.vmem %s0, %s219
      %s221 = smul.u32 8, %s16
      %s222 = smul.u32 8, %s16
      %p223 = scmp.lt.s32.totalorder %s222, 15
      %s224 = scalar_select %p223, %s222, 15
      %s225 = smul.addr %s224, 8
      %s226 = scalar_lea.vmem %s5, %s225
      %s227 = smul.u32 8, %s16
      %v228 = vld [vmem:[%s220] sm:$0xff]
      %v229 = vld [vmem:[%s220 + $0x8] sm:$0xff]
      %v230 = vld [vmem:[%s220 + $0x10] sm:$0xff]
      %v231 = vld [vmem:[%s220 + $0x18] sm:$0xff]
      %v232 = vld [vmem:[%s220 + $0x20] sm:$0xff]
      %v233 = vld [vmem:[%s220 + $0x28] sm:$0xff]
      %v234 = vld [vmem:[%s220 + $0x30] sm:$0xff]
      %v235 = vld [vmem:[%s220 + $0x38] sm:$0xff]
      %v236 = vld [vmem:[%s1] sm:$0xff]
      %v237 = vld [vmem:[%s1 + $0x8] sm:$0xff]
      %v238 = vld [vmem:[%s1 + $0x10] sm:$0xff]
      %v239 = vld [vmem:[%s1 + $0x18] sm:$0xff]
      %v240 = vld [vmem:[%s1 + $0x20] sm:$0xff]
      %v241 = vld [vmem:[%s1 + $0x28] sm:$0xff]
      %v242 = vld [vmem:[%s1 + $0x30] sm:$0xff]
      %v243 = vld [vmem:[%s1 + $0x38] sm:$0xff]
      %v244 = vld [vmem:[%s2] sm:$0x1]
      %v246 = vperm.slane %v244, 0
      %vm248 = vcmask 523264
      %v250 = vsel %vm248, %v228, 0
      %v253 = vsel %vm248, %v229, 0
      %v256 = vsel %vm248, %v230, 0
      %v259 = vsel %vm248, %v231, 0
      %v262 = vsel %vm248, %v232, 0
      %v265 = vsel %vm248, %v233, 0
      %v268 = vsel %vm248, %v234, 0
      %v271 = vsel %vm248, %v235, 0
      %273 = vmatpush.msra.mxu0 0.0
      %274 = vmatpush.msra.mxu0 0.0
      %275 = vmatpush.msra.mxu0 0.0
      %276 = vmatpush.msra.mxu0 0.0
      %277 = vmatpush.msra.mxu0 0.0
      %278 = vmatpush.msra.mxu0 0.0
      %279 = vmatpush.msra.mxu0 0.0
      %280 = vmatpush.msra.mxu0 0.0
      %281 = vmatpush.msra.mxu0 %v243
      %282 = vmatpush.msra.mxu0 %v242
      %283 = vmatpush.msra.mxu0 %v241
      %284 = vmatpush.msra.mxu0 %v240
      %285 = vmatpush.msra.mxu0 %v239
      %286 = vmatpush.msra.mxu0 %v238
      %287 = vmatpush.msra.mxu0 %v237
      %288 = vmatpush.msra.mxu0 %v236
      %289 = vmatmul.f32.gmra.mxu0 %v250
      %v290 = vpop.f32.mrf.mxu0
      %v291 = vadd.f32 %v246, %v290
      %292 = vmatmul.f32.gmra.mxu0 %v253
      %v293 = vpop.f32.mrf.mxu0
      %v294 = vadd.f32 %v246, %v293
      %295 = vmatmul.f32.gmra.mxu0 %v256
      %v296 = vpop.f32.mrf.mxu0
      %v297 = vadd.f32 %v246, %v296
      %298 = vmatmul.f32.gmra.mxu0 %v259
      %v299 = vpop.f32.mrf.mxu0
      %v300 = vadd.f32 %v246, %v299
      %301 = vmatmul.f32.gmra.mxu0 %v262
      %v302 = vpop.f32.mrf.mxu0
      %v303 = vadd.f32 %v246, %v302
      %304 = vmatmul.f32.gmra.mxu0 %v265
      %v305 = vpop.f32.mrf.mxu0
      %v306 = vadd.f32 %v246, %v305
      %307 = vmatmul.f32.gmra.mxu0 %v268
      %v308 = vpop.f32.mrf.mxu0
      %v309 = vadd.f32 %v246, %v308
      %310 = vmatmul.f32.gmra.mxu0 %v271
      %v311 = vpop.f32.mrf.mxu0
      %v312 = vadd.f32 %v246, %v311
      %313 = vdwg.mxu0
      %v314 = vtanh.pop %v291
      %v315 = vtanh.pop %v294
      %v316 = vtanh.pop %v297
      %v317 = vtanh.pop %v300
      %v318 = vtanh.pop %v303
      %v319 = vtanh.pop %v306
      %v320 = vtanh.pop %v309
      %v321 = vtanh.pop %v312
      %v322 = vld [vmem:[%s3] sm:$0xff]
      %v323 = vld [vmem:[%s3 + $0x8] sm:$0xff]
      %v324 = vld [vmem:[%s3 + $0x10] sm:$0xff]
      %v325 = vld [vmem:[%s3 + $0x18] sm:$0xff]
      %v326 = vld [vmem:[%s4] sm:$0x1]
      %v328 = vperm.slane %v326, 0
      %vm330 = vcmask 261120
      %v332 = vsel %vm330, %v314, 0
      %v335 = vsel %vm330, %v315, 0
      %v338 = vsel %vm330, %v316, 0
      %v341 = vsel %vm330, %v317, 0
      %v344 = vsel %vm330, %v318, 0
      %v347 = vsel %vm330, %v319, 0
      %v350 = vsel %vm330, %v320, 0
      %v353 = vsel %vm330, %v321, 0
      %355 = vmatpush.msra.mxu0 0.0
      %356 = vmatpush.msra.mxu0 0.0
      %357 = vmatpush.msra.mxu0 0.0
      %358 = vmatpush.msra.mxu0 0.0
      %359 = vmatpush.msra.mxu0 0.0
      %360 = vmatpush.msra.mxu0 0.0
      %361 = vmatpush.msra.mxu0 0.0
      %362 = vmatpush.msra.mxu0 0.0
      %363 = vmatpush.msra.mxu0 0.0
      %364 = vmatpush.msra.mxu0 0.0
      %365 = vmatpush.msra.mxu0 0.0
      %366 = vmatpush.msra.mxu0 0.0
      %367 = vmatpush.msra.mxu0 %v325
      %368 = vmatpush.msra.mxu0 %v324
      %369 = vmatpush.msra.mxu0 %v323
      %370 = vmatpush.msra.mxu0 %v322
      %371 = vmatmul.f32.gmra.mxu0 %v332
      %v372 = vpop.f32.mrf.mxu0
      %v373 = vadd.f32 %v328, %v372
      %374 = vmatmul.f32.gmra.mxu0 %v335
      %v375 = vpop.f32.mrf.mxu0
      %v376 = vadd.f32 %v328, %v375
      %377 = vmatmul.f32.gmra.mxu0 %v338
      %v378 = vpop.f32.mrf.mxu0
      %v379 = vadd.f32 %v328, %v378
      %380 = vmatmul.f32.gmra.mxu0 %v341
      %v381 = vpop.f32.mrf.mxu0
      %v382 = vadd.f32 %v328, %v381
      %383 = vmatmul.f32.gmra.mxu0 %v344
      %v384 = vpop.f32.mrf.mxu0
      %v385 = vadd.f32 %v328, %v384
      %386 = vmatmul.f32.gmra.mxu0 %v347
      %v387 = vpop.f32.mrf.mxu0
      %v388 = vadd.f32 %v328, %v387
      %389 = vmatmul.f32.gmra.mxu0 %v350
      %v390 = vpop.f32.mrf.mxu0
      %v391 = vadd.f32 %v328, %v390
      %392 = vmatmul.f32.gmra.mxu0 %v353
      %v393 = vpop.f32.mrf.mxu0
      %v394 = vadd.f32 %v328, %v393
      %395 = vdwg.mxu0
      %396 = vst.msk [vmem:[%s226] sm:$0xff] %vm248, %v373
      %397 = vst.msk [vmem:[%s226 + $0x8] sm:$0xff] %vm248, %v376
      %398 = vst.msk [vmem:[%s226 + $0x10] sm:$0xff] %vm248, %v379
      %399 = vst.msk [vmem:[%s226 + $0x18] sm:$0xff] %vm248, %v382
      %400 = vst.msk [vmem:[%s226 + $0x20] sm:$0xff] %vm248, %v385
      %401 = vst.msk [vmem:[%s226 + $0x28] sm:$0xff] %vm248, %v388
      %402 = vst.msk [vmem:[%s226 + $0x30] sm:$0xff] %vm248, %v391
      %403 = vst.msk [vmem:[%s226 + $0x38] sm:$0xff] %vm248, %v394
      %s404 = smul.u32 8, %s16
      %p405 = scmp.lt.s32.totalorder %s404, 15
      %s406 = scalar_select %p405, %s404, 15
      %s407 = smul.addr %s406, 8
      %s408 = scalar_lea.vmem %s5, %s407
      // Predicated region
      $region41: #{tpu_custom_call.1} parent=39 // pred_check
        %p409 = pneg %p144
      $region42: #{tpu_custom_call.1} parent=39 // pred_check_branch
        %411 = sbr.rel (%p409) target = $region44
      $region43: #{tpu_custom_call.1} parent=39 // pred_region
        %s412 = smul.u32 8, %s16
      $region44: #{tpu_custom_call.1} parent=39 // pred_fallthru
        _
    $region40: #{tpu_custom_call.1} parent=5 // pred_fallthru
      _
    %p413 = scmp.le.s32.totalorder 2, %s11
    // Predicated region
    $region45: #{tpu_custom_call.1} parent=5 // pred_check
      %p414 = pneg %p413
    $region46: #{tpu_custom_call.1} parent=5 // pred_check_branch
      %416 = sbr.rel (%p414) target = $region48
    $region47: #{tpu_custom_call.1} parent=5 // pred_region
      %s417 = ssub.s32 %s11, 2
      // Predicated region
      $region49: #{tpu_custom_call.1} parent=47 // pred_check
        %p418 = pneg %p150
      $region50: #{tpu_custom_call.1} parent=47 // pred_check_branch
        %420 = sbr.rel (%p418) target = $region52
      $region51: #{tpu_custom_call.1} parent=47 // pred_region
        %s421 = smul.u32 8, %s17
        %p422 = scmp.lt.s32.totalorder %s421, 15
        %s423 = scalar_select %p422, %s421, 15
        %s424 = smul.addr %s423, 8
        %s425 = scalar_lea.vmem %s5, %s424
      $region52: #{tpu_custom_call.1} parent=47 // pred_fallthru
        _
    $region48: #{tpu_custom_call.1} parent=5 // pred_fallthru
      _
  $region6: #{tpu_custom_call.1} parent=0 // loop_footer
    %s15 = sadd.s32 1, %s11
  $region7: #{tpu_custom_call.1} parent=0 // loop_footer_branch
    %10 = sbr.rel target = $region3
  $region8: #{tpu_custom_call.1} parent=0 // loop_exit
    _

</llo_original>
